<compile_context>
chip_gen: v5e
topology: v5e:2x2
jax: 0.10.0
libtpu: 0.0.40
codegen_flags: <defaults>
</compile_context>

<pallas_src>
import jax
import jax.numpy as jnp
from jax import lax
from jax.experimental import pallas as pl
from jax.experimental.pallas import tpu as pltpu

TOP_K = 3


def _fused_topk_scores(S):
    """XTR score for every group in S.

    S: (G, Nq, Ns) f32 pairwise scores. Groups 0..Bt-1 are the positive
    batches, Bt..2Bt-1 the negative batches (the math is per-group either way).
    Returns (G, 1, 1) f32:  sum_n max_s(S * top3_mask) / clamp(#rows_hit, 1e-3)
    """
    G, Nq, Ns = S.shape

    # Flat (n, s) index; leading dim 1 broadcasts implicitly over G
    # (no batch-replicated int32 materialization).
    flat = (lax.broadcasted_iota(jnp.int32, (1, Nq, Ns), 1) * Ns
            + lax.broadcasted_iota(jnp.int32, (1, Nq, Ns), 2))
    row_iota = lax.broadcasted_iota(jnp.int32, (1, Nq, 1), 1)      # (1, Nq, 1)
    BIG = jnp.int32(Nq * Ns)
    NEG_INF = jnp.float32(-jnp.inf)

    work = S
    # Per-row running statistics (G, Nq, 1) instead of full (G, Nq, Ns) masks.
    row_best = jnp.full((G, Nq, 1), -jnp.inf, dtype=jnp.float32)
    row_hits = jnp.zeros((G, Nq, 1), dtype=jnp.float32)

    for _ in range(TOP_K):  # k is tiny & static -> unrolled
        # Global max (lane reduce + tiny sublane reduce; partials reused).
        row_m = jnp.max(work, axis=-1, keepdims=True)              # (G, Nq, 1)
        m = jnp.max(row_m, axis=-2, keepdims=True)                 # (G, 1, 1)
        # First-occurrence tie-break: smallest flat index among the maxima.
        cand = jnp.where(work == m, flat, BIG)
        sel = jnp.min(jnp.min(cand, axis=-1, keepdims=True),
                      axis=-2, keepdims=True)                      # (G, 1, 1)
        # Exclude the chosen slot for the next iteration.
        work = jnp.where(flat == sel, NEG_INF, work)
        # Which query row did the hit land in? (no integer division needed)
        in_row = (sel >= row_iota * Ns) & (sel < (row_iota + 1) * Ns)  # (G, Nq, 1)
        row_best = jnp.where(in_row, jnp.maximum(row_best, m), row_best)
        row_hits = row_hits + in_row.astype(jnp.float32)

    has_hit = row_hits > 0.0
    full_row = row_hits >= jnp.float32(Ns)      # only possible when Ns <= TOP_K
    # aligned = S * mask; per-row max over s:
    #   row w/o hit                -> 0
    #   row w/ hit + some zeros    -> max(best_selected, 0)
    #   row fully selected         -> best_selected
    row_max_aligned = jnp.where(
        has_hit,
        jnp.where(full_row, row_best, jnp.maximum(row_best, 0.0)),
        0.0)
    Z = jnp.maximum(jnp.sum(has_hit.astype(jnp.float32), axis=-2, keepdims=True),
                    0.001)
    return jnp.sum(row_max_aligned, axis=-2, keepdims=True) / Z    # (G, 1, 1)


def xtr_scores_kernel(q_ref, d_ref, nd_ref, pos_ref, neg_ref):
    Bt = q_ref.shape[0]

    # Fuse pos/neg into one batched matmul + one selection pass:
    #   groups [0, Bt)   -> (q, d)    (positive)
    #   groups [Bt, 2Bt) -> (q, nd)   (negative)
    q2 = jnp.concatenate([q_ref[...], q_ref[...]], axis=0)         # (2Bt, Nq, D)
    kv = jnp.concatenate([d_ref[...], nd_ref[...]], axis=0)        # (2Bt, Ns, D)

    # Native-dtype operands go straight to the MXU; result accumulates in f32.
    S = jnp.einsum('bnd,bsd->bns', q2, kv,
                   preferred_element_type=jnp.float32)             # (2Bt, Nq, Ns)

    scores = _fused_topk_scores(S)                                 # (2Bt, 1, 1)
    pos_ref[...] = scores[:Bt]
    neg_ref[...] = scores[Bt:]


def _pick_batch_block(B, Nq, Ns, D, itemsize, budget_bytes=8 << 20):
    """Largest batch block (== B, or a multiple of 8 dividing B) under a VMEM budget."""
    def footprint(bt):
        inputs = 2 * bt * (Nq + 2 * Ns) * D * itemsize   # double-buffered input blocks
        temps = 4 * (2 * bt) * Nq * Ns * 4               # S / work / compare temporaries (f32)
        return inputs + temps

    if footprint(B) <= budget_bytes:
        return B
    cands = [bt for bt in range(8, B, 8)
             if B % bt == 0 and footprint(bt) <= budget_bytes]
    return max(cands) if cands else B


def xtr_pairwise_ce_loss(query_embeddings, doc_embeddings, neg_doc_embeddings):
    B, Nq, D = query_embeddings.shape
    Ns = doc_embeddings.shape[1]
    itemsize = jnp.dtype(query_embeddings.dtype).itemsize
    block_b = _pick_batch_block(B, Nq, Ns, D, itemsize)
    grid = (B // block_b,)

    in_bytes = (query_embeddings.size + doc_embeddings.size
                + neg_doc_embeddings.size) * itemsize

    pos_scores, neg_scores = pl.pallas_call(
        xtr_scores_kernel,
        out_shape=(jax.ShapeDtypeStruct((B, 1, 1), jnp.float32),
                   jax.ShapeDtypeStruct((B, 1, 1), jnp.float32)),
        grid_spec=pltpu.PrefetchScalarGridSpec(
            num_scalar_prefetch=0,
            grid=grid,
            in_specs=[
                pl.BlockSpec((block_b, Nq, D), lambda i: (i, 0, 0)),
                pl.BlockSpec((block_b, Ns, D), lambda i: (i, 0, 0)),
                pl.BlockSpec((block_b, Ns, D), lambda i: (i, 0, 0)),
            ],
            out_specs=(
                pl.BlockSpec((block_b, 1, 1), lambda i: (i, 0, 0)),
                pl.BlockSpec((block_b, 1, 1), lambda i: (i, 0, 0)),
            ),
        ),
        compiler_params=pltpu.CompilerParams(
            dimension_semantics=("parallel",)),
        cost_estimate=pl.CostEstimate(
            flops=4 * B * Nq * Ns * D,
            transcendentals=0,
            bytes_accessed=in_bytes + 2 * B * 4),
    )(query_embeddings, doc_embeddings, neg_doc_embeddings)

    pos = pos_scores[:, 0, 0]
    neg = neg_scores[:, 0, 0]
    # Tiny (B,)-sized epilogue kept off the kernel critical path.
    return jnp.mean(jax.nn.softplus(neg - pos))


if __name__ == "__main__":
    B, NQ, NS, D = 2, 8, 8, 32
    key = jax.random.PRNGKey(0)
    kq, kd, kn = jax.random.split(key, 3)
    q = jax.random.normal(kq, (B, NQ, D), dtype=jnp.float32)
    d = jax.random.normal(kd, (B, NS, D), dtype=jnp.float32)
    nd = jax.random.normal(kn, (B, NS, D), dtype=jnp.float32)

    loss = jax.jit(xtr_pairwise_ce_loss)(q, d, nd)
    jax.block_until_ready(loss)
    assert loss.shape == () and bool(jnp.isfinite(loss))
    print("KERNEL_OK")
</pallas_src>

<mosaic_0001>
module attributes {stable_mosaic.version = 11 : i64} {
  func.func @xtr_scores_kernel(%arg0: i32, %arg1: memref<2x8x32xf32, #tpu.memory_space<vmem>>, %arg2: memref<2x8x32xf32, #tpu.memory_space<vmem>>, %arg3: memref<2x8x32xf32, #tpu.memory_space<vmem>>, %arg4: memref<2x1x1xf32, #tpu.memory_space<vmem>>, %arg5: memref<2x1x1xf32, #tpu.memory_space<vmem>>) attributes {dimension_semantics = [#tpu.dimension_semantics<parallel>], iteration_bounds = array<i64: 1>, scalar_prefetch = 0 : i64, scratch_operands = 0 : i64, tpu.core_type = #tpu.core_type<tc>, window_params = [{transform_indices = @transform_0, window_bounds = array<i64: 2, 8, 32>}, {transform_indices = @transform_1, window_bounds = array<i64: 2, 8, 32>}, {transform_indices = @transform_2, window_bounds = array<i64: 2, 8, 32>}, {transform_indices = @transform_3, window_bounds = array<i64: 2, 1, 1>}, {transform_indices = @transform_4, window_bounds = array<i64: 2, 1, 1>}]} {
    %c0 = arith.constant 0 : index
    %c0_0 = arith.constant 0 : index
    %c0_1 = arith.constant 0 : index
    %0 = vector.load %arg1[%c0, %c0_0, %c0_1] : memref<2x8x32xf32, #tpu.memory_space<vmem>>, vector<2x8x32xf32>
    %c0_2 = arith.constant 0 : index
    %c0_3 = arith.constant 0 : index
    %c0_4 = arith.constant 0 : index
    %1 = vector.load %arg1[%c0_2, %c0_3, %c0_4] : memref<2x8x32xf32, #tpu.memory_space<vmem>>, vector<2x8x32xf32>
    %2 = tpu.concatenate %0, %1 in 0 : vector<2x8x32xf32>, vector<2x8x32xf32> -> vector<4x8x32xf32>
    %c0_5 = arith.constant 0 : index
    %c0_6 = arith.constant 0 : index
    %c0_7 = arith.constant 0 : index
    %3 = vector.load %arg2[%c0_5, %c0_6, %c0_7] : memref<2x8x32xf32, #tpu.memory_space<vmem>>, vector<2x8x32xf32>
    %c0_8 = arith.constant 0 : index
    %c0_9 = arith.constant 0 : index
    %c0_10 = arith.constant 0 : index
    %4 = vector.load %arg3[%c0_8, %c0_9, %c0_10] : memref<2x8x32xf32, #tpu.memory_space<vmem>>, vector<2x8x32xf32>
    %5 = tpu.concatenate %3, %4 in 0 : vector<2x8x32xf32>, vector<2x8x32xf32> -> vector<4x8x32xf32>
    "tpu.trace_start"() <{level = 10 : i32, message = "bnd,bsd->bns"}> : () -> ()
    %cst = arith.constant dense<0.000000e+00> : vector<4x8x8xf32>
    %6 = tpu.matmul %2, %5, %cst {dimension_numbers = #tpu.dot_dimension_numbers<[2], [2], [1], [1], [0, 0, 0, 1, 1, 1], [0], [0]>} : vector<4x8x32xf32>, vector<4x8x32xf32>, vector<4x8x8xf32> -> vector<4x8x8xf32>
    "tpu.trace_stop"() : () -> ()
    %7 = tpu.iota {dimensions = array<i32: 1>} : vector<1x8x8xi32>
    %c8_i32 = arith.constant 8 : i32
    %8 = vector.broadcast %c8_i32 : i32 to vector<1x8x8xi32>
    %9 = arith.muli %7, %8 : vector<1x8x8xi32>
    %10 = tpu.iota {dimensions = array<i32: 2>} : vector<1x8x8xi32>
    %11 = arith.addi %9, %10 : vector<1x8x8xi32>
    %12 = tpu.iota {dimensions = array<i32: 1>} : vector<1x8x1xi32>
    %cst_11 = arith.constant 0xFF800000 : f32
    %13 = vector.broadcast %cst_11 : f32 to vector<4x8x1xf32>
    %cst_12 = arith.constant 0.000000e+00 : f32
    %14 = vector.broadcast %cst_12 : f32 to vector<4x8x1xf32>
    %cst_13 = arith.constant dense<0xFF800000> : vector<4x8xf32>
    %15 = vector.multi_reduction <maximumf>, %6, %cst_13 [2] : vector<4x8x8xf32> to vector<4x8xf32>
    %16 = vector.shape_cast %15 : vector<4x8xf32> to vector<4x8x1xf32>
    %cst_14 = arith.constant dense<0xFF800000> : vector<4x1xf32>
    %17 = vector.multi_reduction <maximumf>, %16, %cst_14 [1] : vector<4x8x1xf32> to vector<4x1xf32>
    %18 = vector.shape_cast %17 : vector<4x1xf32> to vector<4x1x1xf32>
    %19 = vector.broadcast %18 : vector<4x1x1xf32> to vector<4x8x8xf32>
    %20 = arith.cmpf oeq, %6, %19 : vector<4x8x8xf32>
    %c64_i32 = arith.constant 64 : i32
    %21 = vector.shape_cast %11 : vector<1x8x8xi32> to vector<1x8x8xi32>
    %22 = vector.broadcast %21 : vector<1x8x8xi32> to vector<4x8x8xi32>
    %23 = vector.broadcast %c64_i32 : i32 to vector<4x8x8xi32>
    %24 = arith.select %20, %22, %23 : vector<4x8x8xi1>, vector<4x8x8xi32>
    %cst_15 = arith.constant dense<2147483647> : vector<4x8xi32>
    %25 = vector.multi_reduction <minsi>, %24, %cst_15 [2] : vector<4x8x8xi32> to vector<4x8xi32>
    %26 = vector.shape_cast %25 : vector<4x8xi32> to vector<4x8x1xi32>
    %cst_16 = arith.constant dense<2147483647> : vector<4x1xi32>
    %27 = vector.multi_reduction <minsi>, %26, %cst_16 [1] : vector<4x8x1xi32> to vector<4x1xi32>
    %28 = vector.shape_cast %27 : vector<4x1xi32> to vector<4x1x1xi32>
    %29 = vector.broadcast %11 : vector<1x8x8xi32> to vector<4x8x8xi32>
    %30 = vector.broadcast %28 : vector<4x1x1xi32> to vector<4x8x8xi32>
    %31 = arith.cmpi eq, %29, %30 : vector<4x8x8xi32>
    %cst_17 = arith.constant 0xFF800000 : f32
    %32 = vector.broadcast %cst_17 : f32 to vector<4x8x8xf32>
    %33 = arith.select %31, %32, %6 : vector<4x8x8xi1>, vector<4x8x8xf32>
    %c8_i32_18 = arith.constant 8 : i32
    %34 = vector.broadcast %c8_i32_18 : i32 to vector<1x8x1xi32>
    %35 = arith.muli %12, %34 : vector<1x8x1xi32>
    %36 = vector.broadcast %28 : vector<4x1x1xi32> to vector<4x8x1xi32>
    %37 = vector.broadcast %35 : vector<1x8x1xi32> to vector<4x8x1xi32>
    %38 = arith.cmpi sge, %36, %37 : vector<4x8x1xi32>
    %c1_i32 = arith.constant 1 : i32
    %39 = vector.broadcast %c1_i32 : i32 to vector<1x8x1xi32>
    %40 = arith.addi %12, %39 : vector<1x8x1xi32>
    %c8_i32_19 = arith.constant 8 : i32
    %41 = vector.broadcast %c8_i32_19 : i32 to vector<1x8x1xi32>
    %42 = arith.muli %40, %41 : vector<1x8x1xi32>
    %43 = vector.broadcast %28 : vector<4x1x1xi32> to vector<4x8x1xi32>
    %44 = vector.broadcast %42 : vector<1x8x1xi32> to vector<4x8x1xi32>
    %45 = arith.cmpi slt, %43, %44 : vector<4x8x1xi32>
    %46 = arith.andi %38, %45 : vector<4x8x1xi1>
    %47 = vector.broadcast %18 : vector<4x1x1xf32> to vector<4x8x1xf32>
    %48 = arith.maximumf %13, %47 : vector<4x8x1xf32>
    %49 = arith.select %46, %48, %13 : vector<4x8x1xi1>, vector<4x8x1xf32>
    %50 = arith.extui %46 : vector<4x8x1xi1> to vector<4x8x1xi32>
    %51 = arith.sitofp %50 : vector<4x8x1xi32> to vector<4x8x1xf32>
    %52 = arith.addf %14, %51 : vector<4x8x1xf32>
    %cst_20 = arith.constant dense<0xFF800000> : vector<4x8xf32>
    %53 = vector.multi_reduction <maximumf>, %33, %cst_20 [2] : vector<4x8x8xf32> to vector<4x8xf32>
    %54 = vector.shape_cast %53 : vector<4x8xf32> to vector<4x8x1xf32>
    %cst_21 = arith.constant dense<0xFF800000> : vector<4x1xf32>
    %55 = vector.multi_reduction <maximumf>, %54, %cst_21 [1] : vector<4x8x1xf32> to vector<4x1xf32>
    %56 = vector.shape_cast %55 : vector<4x1xf32> to vector<4x1x1xf32>
    %57 = vector.broadcast %56 : vector<4x1x1xf32> to vector<4x8x8xf32>
    %58 = arith.cmpf oeq, %33, %57 : vector<4x8x8xf32>
    %c64_i32_22 = arith.constant 64 : i32
    %59 = vector.shape_cast %11 : vector<1x8x8xi32> to vector<1x8x8xi32>
    %60 = vector.broadcast %59 : vector<1x8x8xi32> to vector<4x8x8xi32>
    %61 = vector.broadcast %c64_i32_22 : i32 to vector<4x8x8xi32>
    %62 = arith.select %58, %60, %61 : vector<4x8x8xi1>, vector<4x8x8xi32>
    %cst_23 = arith.constant dense<2147483647> : vector<4x8xi32>
    %63 = vector.multi_reduction <minsi>, %62, %cst_23 [2] : vector<4x8x8xi32> to vector<4x8xi32>
    %64 = vector.shape_cast %63 : vector<4x8xi32> to vector<4x8x1xi32>
    %cst_24 = arith.constant dense<2147483647> : vector<4x1xi32>
    %65 = vector.multi_reduction <minsi>, %64, %cst_24 [1] : vector<4x8x1xi32> to vector<4x1xi32>
    %66 = vector.shape_cast %65 : vector<4x1xi32> to vector<4x1x1xi32>
    %67 = vector.broadcast %11 : vector<1x8x8xi32> to vector<4x8x8xi32>
    %68 = vector.broadcast %66 : vector<4x1x1xi32> to vector<4x8x8xi32>
    %69 = arith.cmpi eq, %67, %68 : vector<4x8x8xi32>
    %cst_25 = arith.constant 0xFF800000 : f32
    %70 = vector.broadcast %cst_25 : f32 to vector<4x8x8xf32>
    %71 = arith.select %69, %70, %33 : vector<4x8x8xi1>, vector<4x8x8xf32>
    %c8_i32_26 = arith.constant 8 : i32
    %72 = vector.broadcast %c8_i32_26 : i32 to vector<1x8x1xi32>
    %73 = arith.muli %12, %72 : vector<1x8x1xi32>
    %74 = vector.broadcast %66 : vector<4x1x1xi32> to vector<4x8x1xi32>
    %75 = vector.broadcast %73 : vector<1x8x1xi32> to vector<4x8x1xi32>
    %76 = arith.cmpi sge, %74, %75 : vector<4x8x1xi32>
    %c1_i32_27 = arith.constant 1 : i32
    %77 = vector.broadcast %c1_i32_27 : i32 to vector<1x8x1xi32>
    %78 = arith.addi %12, %77 : vector<1x8x1xi32>
    %c8_i32_28 = arith.constant 8 : i32
    %79 = vector.broadcast %c8_i32_28 : i32 to vector<1x8x1xi32>
    %80 = arith.muli %78, %79 : vector<1x8x1xi32>
    %81 = vector.broadcast %66 : vector<4x1x1xi32> to vector<4x8x1xi32>
    %82 = vector.broadcast %80 : vector<1x8x1xi32> to vector<4x8x1xi32>
    %83 = arith.cmpi slt, %81, %82 : vector<4x8x1xi32>
    %84 = arith.andi %76, %83 : vector<4x8x1xi1>
    %85 = vector.broadcast %56 : vector<4x1x1xf32> to vector<4x8x1xf32>
    %86 = arith.maximumf %49, %85 : vector<4x8x1xf32>
    %87 = arith.select %84, %86, %49 : vector<4x8x1xi1>, vector<4x8x1xf32>
    %88 = arith.extui %84 : vector<4x8x1xi1> to vector<4x8x1xi32>
    %89 = arith.sitofp %88 : vector<4x8x1xi32> to vector<4x8x1xf32>
    %90 = arith.addf %52, %89 : vector<4x8x1xf32>
    %cst_29 = arith.constant dense<0xFF800000> : vector<4x8xf32>
    %91 = vector.multi_reduction <maximumf>, %71, %cst_29 [2] : vector<4x8x8xf32> to vector<4x8xf32>
    %92 = vector.shape_cast %91 : vector<4x8xf32> to vector<4x8x1xf32>
    %cst_30 = arith.constant dense<0xFF800000> : vector<4x1xf32>
    %93 = vector.multi_reduction <maximumf>, %92, %cst_30 [1] : vector<4x8x1xf32> to vector<4x1xf32>
    %94 = vector.shape_cast %93 : vector<4x1xf32> to vector<4x1x1xf32>
    %95 = vector.broadcast %94 : vector<4x1x1xf32> to vector<4x8x8xf32>
    %96 = arith.cmpf oeq, %71, %95 : vector<4x8x8xf32>
    %c64_i32_31 = arith.constant 64 : i32
    %97 = vector.shape_cast %11 : vector<1x8x8xi32> to vector<1x8x8xi32>
    %98 = vector.broadcast %97 : vector<1x8x8xi32> to vector<4x8x8xi32>
    %99 = vector.broadcast %c64_i32_31 : i32 to vector<4x8x8xi32>
    %100 = arith.select %96, %98, %99 : vector<4x8x8xi1>, vector<4x8x8xi32>
    %cst_32 = arith.constant dense<2147483647> : vector<4x8xi32>
    %101 = vector.multi_reduction <minsi>, %100, %cst_32 [2] : vector<4x8x8xi32> to vector<4x8xi32>
    %102 = vector.shape_cast %101 : vector<4x8xi32> to vector<4x8x1xi32>
    %cst_33 = arith.constant dense<2147483647> : vector<4x1xi32>
    %103 = vector.multi_reduction <minsi>, %102, %cst_33 [1] : vector<4x8x1xi32> to vector<4x1xi32>
    %104 = vector.shape_cast %103 : vector<4x1xi32> to vector<4x1x1xi32>
    %c8_i32_34 = arith.constant 8 : i32
    %105 = vector.broadcast %c8_i32_34 : i32 to vector<1x8x1xi32>
    %106 = arith.muli %12, %105 : vector<1x8x1xi32>
    %107 = vector.broadcast %104 : vector<4x1x1xi32> to vector<4x8x1xi32>
    %108 = vector.broadcast %106 : vector<1x8x1xi32> to vector<4x8x1xi32>
    %109 = arith.cmpi sge, %107, %108 : vector<4x8x1xi32>
    %c1_i32_35 = arith.constant 1 : i32
    %110 = vector.broadcast %c1_i32_35 : i32 to vector<1x8x1xi32>
    %111 = arith.addi %12, %110 : vector<1x8x1xi32>
    %c8_i32_36 = arith.constant 8 : i32
    %112 = vector.broadcast %c8_i32_36 : i32 to vector<1x8x1xi32>
    %113 = arith.muli %111, %112 : vector<1x8x1xi32>
    %114 = vector.broadcast %104 : vector<4x1x1xi32> to vector<4x8x1xi32>
    %115 = vector.broadcast %113 : vector<1x8x1xi32> to vector<4x8x1xi32>
    %116 = arith.cmpi slt, %114, %115 : vector<4x8x1xi32>
    %117 = arith.andi %109, %116 : vector<4x8x1xi1>
    %118 = vector.broadcast %94 : vector<4x1x1xf32> to vector<4x8x1xf32>
    %119 = arith.maximumf %87, %118 : vector<4x8x1xf32>
    %120 = arith.select %117, %119, %87 : vector<4x8x1xi1>, vector<4x8x1xf32>
    %121 = arith.extui %117 : vector<4x8x1xi1> to vector<4x8x1xi32>
    %122 = arith.sitofp %121 : vector<4x8x1xi32> to vector<4x8x1xf32>
    %123 = arith.addf %90, %122 : vector<4x8x1xf32>
    %cst_37 = arith.constant 0.000000e+00 : f32
    %124 = vector.broadcast %cst_37 : f32 to vector<4x8x1xf32>
    %125 = arith.cmpf ogt, %123, %124 : vector<4x8x1xf32>
    %cst_38 = arith.constant 8.000000e+00 : f32
    %126 = vector.broadcast %cst_38 : f32 to vector<4x8x1xf32>
    %127 = arith.cmpf oge, %123, %126 : vector<4x8x1xf32>
    %cst_39 = arith.constant 0.000000e+00 : f32
    %128 = vector.broadcast %cst_39 : f32 to vector<4x8x1xf32>
    %129 = arith.maximumf %120, %128 : vector<4x8x1xf32>
    %130 = arith.select %127, %120, %129 : vector<4x8x1xi1>, vector<4x8x1xf32>
    %cst_40 = arith.constant 0.000000e+00 : f32
    %131 = vector.broadcast %cst_40 : f32 to vector<4x8x1xf32>
    %132 = arith.select %125, %130, %131 : vector<4x8x1xi1>, vector<4x8x1xf32>
    %133 = arith.extui %125 : vector<4x8x1xi1> to vector<4x8x1xi32>
    %134 = arith.sitofp %133 : vector<4x8x1xi32> to vector<4x8x1xf32>
    %cst_41 = arith.constant dense<0.000000e+00> : vector<4x1xf32>
    %135 = vector.multi_reduction <add>, %134, %cst_41 [1] : vector<4x8x1xf32> to vector<4x1xf32>
    %136 = vector.shape_cast %135 : vector<4x1xf32> to vector<4x1x1xf32>
    %cst_42 = arith.constant 1.000000e-03 : f32
    %137 = vector.broadcast %cst_42 : f32 to vector<4x1x1xf32>
    %138 = arith.maximumf %136, %137 : vector<4x1x1xf32>
    %cst_43 = arith.constant dense<0.000000e+00> : vector<4x1xf32>
    %139 = vector.multi_reduction <add>, %132, %cst_43 [1] : vector<4x8x1xf32> to vector<4x1xf32>
    %140 = vector.shape_cast %139 : vector<4x1xf32> to vector<4x1x1xf32>
    %141 = arith.divf %140, %138 : vector<4x1x1xf32>
    %142 = vector.extract_strided_slice %141 {offsets = [0, 0, 0], sizes = [2, 1, 1], strides = [1, 1, 1]} : vector<4x1x1xf32> to vector<2x1x1xf32>
    %c0_44 = arith.constant 0 : index
    %c0_45 = arith.constant 0 : index
    %c0_46 = arith.constant 0 : index
    %143 = vector.load %arg4[%c0_44, %c0_45, %c0_46] : memref<2x1x1xf32, #tpu.memory_space<vmem>>, vector<2x1x1xf32>
    tpu.vector_store %arg4[%c0_44, %c0_45, %c0_46], %142 {strides = array<i32>} : memref<2x1x1xf32, #tpu.memory_space<vmem>>, vector<2x1x1xf32>,
    %144 = vector.extract_strided_slice %141 {offsets = [2, 0, 0], sizes = [2, 1, 1], strides = [1, 1, 1]} : vector<4x1x1xf32> to vector<2x1x1xf32>
    %c0_47 = arith.constant 0 : index
    %c0_48 = arith.constant 0 : index
    %c0_49 = arith.constant 0 : index
    %145 = vector.load %arg5[%c0_47, %c0_48, %c0_49] : memref<2x1x1xf32, #tpu.memory_space<vmem>>, vector<2x1x1xf32>
    tpu.vector_store %arg5[%c0_47, %c0_48, %c0_49], %144 {strides = array<i32>} : memref<2x1x1xf32, #tpu.memory_space<vmem>>, vector<2x1x1xf32>,
    return
  }
  func.func @transform_0(%arg0: i32) -> (i32, i32, i32) {
    %c0_i32 = arith.constant 0 : i32
    %c0_i32_0 = arith.constant 0 : i32
    %c0_i32_1 = arith.constant 0 : i32
    return %arg0, %c0_i32, %c0_i32_0 : i32, i32, i32
  }
  func.func @transform_1(%arg0: i32) -> (i32, i32, i32) {
    %c0_i32 = arith.constant 0 : i32
    %c0_i32_0 = arith.constant 0 : i32
    %c0_i32_1 = arith.constant 0 : i32
    return %arg0, %c0_i32, %c0_i32_0 : i32, i32, i32
  }
  func.func @transform_2(%arg0: i32) -> (i32, i32, i32) {
    %c0_i32 = arith.constant 0 : i32
    %c0_i32_0 = arith.constant 0 : i32
    %c0_i32_1 = arith.constant 0 : i32
    return %arg0, %c0_i32, %c0_i32_0 : i32, i32, i32
  }
  func.func @transform_3(%arg0: i32) -> (i32, i32, i32) {
    %c0_i32 = arith.constant 0 : i32
    %c0_i32_0 = arith.constant 0 : i32
    %c0_i32_1 = arith.constant 0 : i32
    return %arg0, %c0_i32, %c0_i32_0 : i32, i32, i32
  }
  func.func @transform_4(%arg0: i32) -> (i32, i32, i32) {
    %c0_i32 = arith.constant 0 : i32
    %c0_i32_0 = arith.constant 0 : i32
    %c0_i32_1 = arith.constant 0 : i32
    return %arg0, %c0_i32, %c0_i32_0 : i32, i32, i32
  }
}

</mosaic_0001>

<llo_original>
// kernel: xtr_pairwise_ce_loss.1
$region0: #{xtr_pairwise_ce_loss.1}
  #allocation0 [shape = 'u32[]', space=smem, size = 0x4, offset = 0x4, fixed_abs, tag = 'smem constant byte address 0x4 - core index']
  #allocation1 [shape = 'u32[72,128]{1,0:T(1,128)}', space=vmem, size = 0x9000, scoped, tag = 'internal scratch']
  %s0 = inlined_call_operand.hbm [shape: f32[2,8,32], index: 0, kind: input, shape index: {}]
  %s1 = inlined_call_operand.hbm [shape: f32[2,8,32], index: 1, kind: input, shape index: {}]
  %s2 = inlined_call_operand.hbm [shape: f32[2,8,32], index: 2, kind: input, shape index: {}]
  %s3 = inlined_call_operand.vmem [shape: f32[2,1,1], index: 3, kind: output, shape index: {0}]
  %s4 = inlined_call_operand.vmem [shape: f32[2,1,1], index: 4, kind: output, shape index: {1}]
  %5 = xla_tuple %s3, %s4
  %s6 = sld [smem:[#allocation0]]
  $region42: #{xtr_pairwise_ce_loss.1} parent=0
    _
  %s8 = ssub.s32 1, %s6
  %s9 = scalar_select 0, %s8, %s6
  $region1: #{xtr_pairwise_ce_loss.1} parent=0
    #allocation2 [shape = 'u8[8192]{0}', space=vmem, size = 0x2000, scoped, tag = 'input window, operand 0, single buffered']
    #allocation3 [shape = 's32[1]{0}', space=sflag, size = 0x4, scoped, tag = 'scoped memory for xtr_pairwise_ce_loss.1']
    #allocation4 [shape = 'u8[8192]{0}', space=vmem, size = 0x2000, scoped, tag = 'input window, operand 1, single buffered']
    #allocation5 [shape = 's32[1]{0}', space=sflag, size = 0x4, scoped, tag = 'scoped memory for xtr_pairwise_ce_loss.1']
    #allocation6 [shape = 'u8[8192]{0}', space=vmem, size = 0x2000, scoped, tag = 'input window, operand 2, single buffered']
    %10 = vsyncpa [#allocation3], 0
    %11 = vsyncpa [#allocation5], 0
    // Predicated region
    $region2: #{xtr_pairwise_ce_loss.1} parent=1 // pred_check
      _
    $region3: #{xtr_pairwise_ce_loss.1} parent=1 // pred_check_branch
      %13 = sbr.rel (0) target = $region5
    $region4: #{xtr_pairwise_ce_loss.1} parent=1 // pred_region
      %15 = vsyncadd [#allocation3], 0
      %s16 = sshll.u32 %s0, 4
      %s17 = int_to_ptr.hbm [resolvable:$true] %s16
      %s18 = sshll.u32 [#allocation2], 4
      %s19 = int_to_ptr.vmem [resolvable:$true] %s18
      %24 = dma.hbm_to_vmem [thread:$0]  %s17, 256, %s19, [#allocation3], 128, 128, 8
    $region5: #{xtr_pairwise_ce_loss.1} parent=1 // pred_fallthru
      _
    // Predicated region
    $region6: #{xtr_pairwise_ce_loss.1} parent=1 // pred_check
      _
    $region7: #{xtr_pairwise_ce_loss.1} parent=1 // pred_check_branch
      %26 = sbr.rel (0) target = $region9
    $region8: #{xtr_pairwise_ce_loss.1} parent=1 // pred_region
      %28 = vsyncadd [#allocation5], 0
      %s29 = sshll.u32 %s1, 4
      %s30 = int_to_ptr.hbm [resolvable:$true] %s29
      %s31 = sshll.u32 [#allocation4], 4
      %s32 = int_to_ptr.vmem [resolvable:$true] %s31
      %37 = dma.hbm_to_vmem [thread:$0]  %s30, 256, %s32, [#allocation5], 128, 128, 8
    $region9: #{xtr_pairwise_ce_loss.1} parent=1 // pred_fallthru
      _
    // Predicated region
    $region10: #{xtr_pairwise_ce_loss.1} parent=1 // pred_check
      _
    $region11: #{xtr_pairwise_ce_loss.1} parent=1 // pred_check_branch
      %39 = sbr.rel (0) target = $region13
    $region12: #{xtr_pairwise_ce_loss.1} parent=1 // pred_region
      %41 = vsyncadd [#allocation5], 0
      %s42 = sshll.u32 %s2, 4
      %s43 = int_to_ptr.hbm [resolvable:$true] %s42
      %s44 = sshll.u32 [#allocation6], 4
      %s45 = int_to_ptr.vmem [resolvable:$true] %s44
      %50 = dma.hbm_to_vmem [thread:$0]  %s43, 256, %s45, [#allocation5], 128, 128, 8
    $region13: #{xtr_pairwise_ce_loss.1} parent=1 // pred_fallthru
      _
    // Predicated region
    $region14: #{xtr_pairwise_ce_loss.1} parent=1 // pred_check
      _
    $region15: #{xtr_pairwise_ce_loss.1} parent=1 // pred_check_branch
      %52 = sbr.rel (0) target = $region17
    $region16: #{xtr_pairwise_ce_loss.1} parent=1 // pred_region
      %54 = dma.done [#allocation3], 256
    $region17: #{xtr_pairwise_ce_loss.1} parent=1 // pred_fallthru
      _
    // Predicated region
    $region18: #{xtr_pairwise_ce_loss.1} parent=1 // pred_check
      _
    $region19: #{xtr_pairwise_ce_loss.1} parent=1 // pred_check_branch
      %56 = sbr.rel (0) target = $region21
    $region20: #{xtr_pairwise_ce_loss.1} parent=1 // pred_region
      %58 = dma.done [#allocation5], 256
    $region21: #{xtr_pairwise_ce_loss.1} parent=1 // pred_fallthru
      _
    // Predicated region
    $region22: #{xtr_pairwise_ce_loss.1} parent=1 // pred_check
      _
    $region23: #{xtr_pairwise_ce_loss.1} parent=1 // pred_check_branch
      %60 = sbr.rel (0) target = $region25
    $region24: #{xtr_pairwise_ce_loss.1} parent=1 // pred_region
      %62 = dma.done [#allocation5], 256
    $region25: #{xtr_pairwise_ce_loss.1} parent=1 // pred_fallthru
      _
    %v63 = vld [vmem:[#allocation2] sm:$0xff]
    %v64 = vld [vmem:[#allocation2 + $0x8] sm:$0xff]
    %v65 = vld [vmem:[#allocation4] sm:$0xff]
    %v66 = vld [vmem:[#allocation4 + $0x8] sm:$0xff]
    %v67 = vld [vmem:[#allocation6] sm:$0xff]
    %v68 = vld [vmem:[#allocation6 + $0x8] sm:$0xff]
    %vm69 = vcmask 261120
    %v71 = vsel %vm69, %v63, 0
    %v74 = vsel %vm69, %v65, 0
    %76 = vmatpush.xpose.msra.mxu0 0.0
    %77 = vmatpush.xpose.msra.mxu0 0.0
    %78 = vmatpush.xpose.msra.mxu0 0.0
    %79 = vmatpush.xpose.msra.mxu0 0.0
    %80 = vmatpush.xpose.msra.mxu0 0.0
    %81 = vmatpush.xpose.msra.mxu0 0.0
    %82 = vmatpush.xpose.msra.mxu0 0.0
    %83 = vmatpush.xpose.msra.mxu0 0.0
    %84 = vmatpush.xpose.msra.mxu0 0.0
    %85 = vmatpush.xpose.msra.mxu0 0.0
    %86 = vmatpush.xpose.msra.mxu0 0.0
    %87 = vmatpush.xpose.msra.mxu0 0.0
    %88 = vmatpush.xpose.msra.mxu0 0.0
    %89 = vmatpush.xpose.msra.mxu0 0.0
    %90 = vmatpush.xpose.msra.mxu0 0.0
    %91 = vmatpush.xpose.msra.mxu0 %v74
    %92 = vmatmul.f32.gmra.mxu0 %v71
    %v93 = vpop.f32.mrf.mxu0
    %v94 = vadd.f32 0.0, %v93
    %95 = vdwg.mxu0
    %v97 = vsel %vm69, %v64, 0
    %v100 = vsel %vm69, %v66, 0
    %102 = vmatpush.xpose.msra.mxu0 0.0
    %103 = vmatpush.xpose.msra.mxu0 0.0
    %104 = vmatpush.xpose.msra.mxu0 0.0
    %105 = vmatpush.xpose.msra.mxu0 0.0
    %106 = vmatpush.xpose.msra.mxu0 0.0
    %107 = vmatpush.xpose.msra.mxu0 0.0
    %108 = vmatpush.xpose.msra.mxu0 0.0
    %109 = vmatpush.xpose.msra.mxu0 0.0
    %110 = vmatpush.xpose.msra.mxu0 0.0
    %111 = vmatpush.xpose.msra.mxu0 0.0
    %112 = vmatpush.xpose.msra.mxu0 0.0
    %113 = vmatpush.xpose.msra.mxu0 0.0
    %114 = vmatpush.xpose.msra.mxu0 0.0
    %115 = vmatpush.xpose.msra.mxu0 0.0
    %116 = vmatpush.xpose.msra.mxu0 0.0
    %117 = vmatpush.xpose.msra.mxu0 %v100
    %118 = vmatmul.f32.gmra.mxu0 %v97
    %v119 = vpop.f32.mrf.mxu0
    %v120 = vadd.f32 0.0, %v119
    %121 = vdwg.mxu0
    %v123 = vsel %vm69, %v67, 0
    %125 = vmatpush.xpose.msra.mxu0 0.0
    %126 = vmatpush.xpose.msra.mxu0 0.0
    %127 = vmatpush.xpose.msra.mxu0 0.0
    %128 = vmatpush.xpose.msra.mxu0 0.0
    %129 = vmatpush.xpose.msra.mxu0 0.0
    %130 = vmatpush.xpose.msra.mxu0 0.0
    %131 = vmatpush.xpose.msra.mxu0 0.0
    %132 = vmatpush.xpose.msra.mxu0 0.0
    %133 = vmatpush.xpose.msra.mxu0 0.0
    %134 = vmatpush.xpose.msra.mxu0 0.0
    %135 = vmatpush.xpose.msra.mxu0 0.0
    %136 = vmatpush.xpose.msra.mxu0 0.0
    %137 = vmatpush.xpose.msra.mxu0 0.0
    %138 = vmatpush.xpose.msra.mxu0 0.0
    %139 = vmatpush.xpose.msra.mxu0 0.0
    %140 = vmatpush.xpose.msra.mxu0 %v123
    %141 = vmatmul.f32.gmra.mxu0 %v71
    %v142 = vpop.f32.mrf.mxu0
    %v143 = vadd.f32 0.0, %v142
    %144 = vdwg.mxu0
    %v146 = vsel %vm69, %v68, 0
    %148 = vmatpush.xpose.msra.mxu0 0.0
    %149 = vmatpush.xpose.msra.mxu0 0.0
    %150 = vmatpush.xpose.msra.mxu0 0.0
    %151 = vmatpush.xpose.msra.mxu0 0.0
    %152 = vmatpush.xpose.msra.mxu0 0.0
    %153 = vmatpush.xpose.msra.mxu0 0.0
    %154 = vmatpush.xpose.msra.mxu0 0.0
    %155 = vmatpush.xpose.msra.mxu0 0.0
    %156 = vmatpush.xpose.msra.mxu0 0.0
    %157 = vmatpush.xpose.msra.mxu0 0.0
    %158 = vmatpush.xpose.msra.mxu0 0.0
    %159 = vmatpush.xpose.msra.mxu0 0.0
    %160 = vmatpush.xpose.msra.mxu0 0.0
    %161 = vmatpush.xpose.msra.mxu0 0.0
    %162 = vmatpush.xpose.msra.mxu0 0.0
    %163 = vmatpush.xpose.msra.mxu0 %v146
    %164 = vmatmul.f32.gmra.mxu0 %v97
    %v165 = vpop.f32.mrf.mxu0
    %v166 = vadd.f32 0.0, %v165
    %167 = vdwg.mxu0
    %v168 = vlaneseq
    %v169 = vshrl.u32 %v168, 7
    %v170 = vmul.u32 %v169, 8
    %v171 = vlaneseq
    %v172 = vand.u32 %v171, 127
    %v173 = vadd.s32 %v170, %v172
    %vm174 = vcmask 64512
    %v175 = vsel %vm174, %v94, -inf
    %176 = vmax.xlane.f32.xlu0 %v175
    %v177 = vpop.xlane.xlu0 %176
    %v178 = vsel %vm174, %v120, -inf
    %179 = vmax.xlane.f32.xlu0 %v178
    %v180 = vpop.xlane.xlu0 %179
    %v181 = vsel %vm174, %v143, -inf
    %182 = vmax.xlane.f32.xlu0 %v181
    %v183 = vpop.xlane.xlu0 %182
    %v184 = vsel %vm174, %v166, -inf
    %185 = vmax.xlane.f32.xlu0 %v184
    %v186 = vpop.xlane.xlu0 %185
    %v187 = vrot.slane %v177, 4
    %v188 = vmax.f32 %v177, %v187
    %v189 = vrot.slane %v188, 2
    %v190 = vmax.f32 %v188, %v189
    %v191 = vrot.slane %v190, 1
    %v192 = vmax.f32 %v190, %v191
    %v193 = vrot.slane %v180, 4
    %v194 = vmax.f32 %v180, %v193
    %v195 = vrot.slane %v194, 2
    %v196 = vmax.f32 %v194, %v195
    %v197 = vrot.slane %v196, 1
    %v198 = vmax.f32 %v196, %v197
    %v199 = vrot.slane %v183, 4
    %v200 = vmax.f32 %v183, %v199
    %v201 = vrot.slane %v200, 2
    %v202 = vmax.f32 %v200, %v201
    %v203 = vrot.slane %v202, 1
    %v204 = vmax.f32 %v202, %v203
    %v205 = vrot.slane %v186, 4
    %v206 = vmax.f32 %v186, %v205
    %v207 = vrot.slane %v206, 2
    %v208 = vmax.f32 %v206, %v207
    %v209 = vrot.slane %v208, 1
    %v210 = vmax.f32 %v208, %v209
    %vm211 = vcmp.eq.f32.partialorder %v94, %v192
    %vm212 = vcmp.eq.f32.partialorder %v120, %v198
    %vm213 = vcmp.eq.f32.partialorder %v143, %v204
    %vm214 = vcmp.eq.f32.partialorder %v166, %v210
    %v215 = vsel %vm211, %v173, 64
    %v216 = vsel %vm212, %v173, 64
    %v217 = vsel %vm213, %v173, 64
    %v218 = vsel %vm214, %v173, 64
    %v219 = vsel %vm174, %v215, 2147483647
    %v220 = vand.u32 %v219, 65535
    %v221 = vshra.s32 %v219, 16
    %v222 = vcvt.s32.f32 %v220
    %v223 = vcvt.s32.f32 %v221
    %224 = vmin.xlane.f32.xlu0 %v223
    %v225 = vpop.xlane.xlu0 %224
    %vm226 = vcmp.eq.f32.partialorder %v223, %v225
    %v227 = vsel %vm226, %v222, inf
    %228 = vmin.xlane.f32.xlu0 %v227
    %v229 = vpop.xlane.xlu0 %228
    %v230 = vcvt.f32.s32 %v229
    %v231 = vcvt.f32.s32 %v225
    %v232 = vshll.u32 %v231, 16
    %v233 = vadd.s32 %v232, %v230
    %v234 = vsel %vm174, %v216, 2147483647
    %v235 = vand.u32 %v234, 65535
    %v236 = vshra.s32 %v234, 16
    %v237 = vcvt.s32.f32 %v235
    %v238 = vcvt.s32.f32 %v236
    %239 = vmin.xlane.f32.xlu0 %v238
    %v240 = vpop.xlane.xlu0 %239
    %vm241 = vcmp.eq.f32.partialorder %v238, %v240
    %v242 = vsel %vm241, %v237, inf
    %243 = vmin.xlane.f32.xlu0 %v242
    %v244 = vpop.xlane.xlu0 %243
    %v245 = vcvt.f32.s32 %v244
    %v246 = vcvt.f32.s32 %v240
    %v247 = vshll.u32 %v246, 16
    %v248 = vadd.s32 %v247, %v245
    %v249 = vsel %vm174, %v217, 2147483647
    %v250 = vand.u32 %v249, 65535
    %v251 = vshra.s32 %v249, 16
    %v252 = vcvt.s32.f32 %v250
    %v253 = vcvt.s32.f32 %v251
    %254 = vmin.xlane.f32.xlu0 %v253
    %v255 = vpop.xlane.xlu0 %254
    %vm256 = vcmp.eq.f32.partialorder %v253, %v255
    %v257 = vsel %vm256, %v252, inf
    %258 = vmin.xlane.f32.xlu0 %v257
    %v259 = vpop.xlane.xlu0 %258
    %v260 = vcvt.f32.s32 %v259
    %v261 = vcvt.f32.s32 %v255
    %v262 = vshll.u32 %v261, 16
    %v263 = vadd.s32 %v262, %v260
    %v264 = vsel %vm174, %v218, 2147483647
    %v265 = vand.u32 %v264, 65535
    %v266 = vshra.s32 %v264, 16
    %v267 = vcvt.s32.f32 %v265
    %v268 = vcvt.s32.f32 %v266
    %269 = vmin.xlane.f32.xlu0 %v268
    %v270 = vpop.xlane.xlu0 %269
    %vm271 = vcmp.eq.f32.partialorder %v268, %v270
    %v272 = vsel %vm271, %v267, inf
    %273 = vmin.xlane.f32.xlu0 %v272
    %v274 = vpop.xlane.xlu0 %273
    %v275 = vcvt.f32.s32 %v274
    %v276 = vcvt.f32.s32 %v270
    %v277 = vshll.u32 %v276, 16
    %v278 = vadd.s32 %v277, %v275
    %v279 = vrot.slane %v233, 4
    %vm280 = vcmp.lt.s32.totalorder %v233, %v279
    %v281 = vsel %vm280, %v233, %v279
    %v282 = vrot.slane %v281, 2
    %vm283 = vcmp.lt.s32.totalorder %v281, %v282
    %v284 = vsel %vm283, %v281, %v282
    %v285 = vrot.slane %v284, 1
    %vm286 = vcmp.lt.s32.totalorder %v284, %v285
    %v287 = vsel %vm286, %v284, %v285
    %v288 = vrot.slane %v248, 4
    %vm289 = vcmp.lt.s32.totalorder %v248, %v288
    %v290 = vsel %vm289, %v248, %v288
    %v291 = vrot.slane %v290, 2
    %vm292 = vcmp.lt.s32.totalorder %v290, %v291
    %v293 = vsel %vm292, %v290, %v291
    %v294 = vrot.slane %v293, 1
    %vm295 = vcmp.lt.s32.totalorder %v293, %v294
    %v296 = vsel %vm295, %v293, %v294
    %v297 = vrot.slane %v263, 4
    %vm298 = vcmp.lt.s32.totalorder %v263, %v297
    %v299 = vsel %vm298, %v263, %v297
    %v300 = vrot.slane %v299, 2
    %vm301 = vcmp.lt.s32.totalorder %v299, %v300
    %v302 = vsel %vm301, %v299, %v300
    %v303 = vrot.slane %v302, 1
    %vm304 = vcmp.lt.s32.totalorder %v302, %v303
    %v305 = vsel %vm304, %v302, %v303
    %v306 = vrot.slane %v278, 4
    %vm307 = vcmp.lt.s32.totalorder %v278, %v306
    %v308 = vsel %vm307, %v278, %v306
    %v309 = vrot.slane %v308, 2
    %vm310 = vcmp.lt.s32.totalorder %v308, %v309
    %v311 = vsel %vm310, %v308, %v309
    %v312 = vrot.slane %v311, 1
    %vm313 = vcmp.lt.s32.totalorder %v311, %v312
    %v314 = vsel %vm313, %v311, %v312
    %vm315 = vcmp.eq.s32.totalorder %v173, %v287
    %vm316 = vcmp.eq.s32.totalorder %v173, %v296
    %vm317 = vcmp.eq.s32.totalorder %v173, %v305
    %vm318 = vcmp.eq.s32.totalorder %v173, %v314
    %v319 = vsel %vm315, -inf, %v94
    %v320 = vsel %vm316, -inf, %v120
    %v321 = vsel %vm317, -inf, %v143
    %v322 = vsel %vm318, -inf, %v166
    %vm323 = vcmp.ge.s32.totalorder %v287, %v170
    %vm324 = vcmp.ge.s32.totalorder %v296, %v170
    %vm325 = vcmp.ge.s32.totalorder %v305, %v170
    %vm326 = vcmp.ge.s32.totalorder %v314, %v170
    %v327 = vadd.s32 %v169, 1
    %v328 = vmul.u32 %v327, 8
    %vm329 = vcmp.lt.s32.totalorder %v287, %v328
    %vm330 = vcmp.lt.s32.totalorder %v296, %v328
    %vm331 = vcmp.lt.s32.totalorder %v305, %v328
    %vm332 = vcmp.lt.s32.totalorder %v314, %v328
    %vm333 = vmand %vm323, %vm329
    %vm334 = vmand %vm324, %vm330
    %vm335 = vmand %vm325, %vm331
    %vm336 = vmand %vm326, %vm332
    %v337 = vsel %vm333, %v192, -inf
    %v338 = vsel %vm334, %v198, -inf
    %v339 = vsel %vm335, %v204, -inf
    %v340 = vsel %vm336, %v210, -inf
    %v341 = vsel %vm333, 1, 0
    %v342 = vsel %vm334, 1, 0
    %v343 = vsel %vm335, 1, 0
    %v344 = vsel %vm336, 1, 0
    %v345 = vcvt.s32.f32 %v341
    %v346 = vcvt.s32.f32 %v342
    %v347 = vcvt.s32.f32 %v343
    %v348 = vcvt.s32.f32 %v344
    %v349 = vadd.f32 %v345, 0.0
    %v350 = vadd.f32 %v346, 0.0
    %v351 = vadd.f32 %v347, 0.0
    %v352 = vadd.f32 %v348, 0.0
    %v353 = vsel %vm174, %v319, -inf
    %354 = vmax.xlane.f32.xlu0 %v353
    %v355 = vpop.xlane.xlu0 %354
    %v356 = vsel %vm174, %v320, -inf
    %357 = vmax.xlane.f32.xlu0 %v356
    %v358 = vpop.xlane.xlu0 %357
    %v359 = vsel %vm174, %v321, -inf
    %360 = vmax.xlane.f32.xlu0 %v359
    %v361 = vpop.xlane.xlu0 %360
    %v362 = vsel %vm174, %v322, -inf
    %363 = vmax.xlane.f32.xlu0 %v362
    %v364 = vpop.xlane.xlu0 %363
    %v365 = vrot.slane %v355, 4
    %v366 = vmax.f32 %v355, %v365
    %v367 = vrot.slane %v366, 2
    %v368 = vmax.f32 %v366, %v367
    %v369 = vrot.slane %v368, 1
    %v370 = vmax.f32 %v368, %v369
    %v371 = vrot.slane %v358, 4
    %v372 = vmax.f32 %v358, %v371
    %v373 = vrot.slane %v372, 2
    %v374 = vmax.f32 %v372, %v373
    %v375 = vrot.slane %v374, 1
    %v376 = vmax.f32 %v374, %v375
    %v377 = vrot.slane %v361, 4
    %v378 = vmax.f32 %v361, %v377
    %v379 = vrot.slane %v378, 2
    %v380 = vmax.f32 %v378, %v379
    %v381 = vrot.slane %v380, 1
    %v382 = vmax.f32 %v380, %v381
    %v383 = vrot.slane %v364, 4
    %v384 = vmax.f32 %v364, %v383
    %v385 = vrot.slane %v384, 2
    %v386 = vmax.f32 %v384, %v385
    %v387 = vrot.slane %v386, 1
    %v388 = vmax.f32 %v386, %v387
    %vm389 = vcmp.eq.f32.partialorder %v319, %v370
    %vm390 = vcmp.eq.f32.partialorder %v320, %v376
    %vm391 = vcmp.eq.f32.partialorder %v321, %v382
    %vm392 = vcmp.eq.f32.partialorder %v322, %v388
    %v393 = vsel %vm389, %v173, 64
    %v394 = vsel %vm390, %v173, 64
    %v395 = vsel %vm391, %v173, 64
    %v396 = vsel %vm392, %v173, 64
    %v397 = vsel %vm174, %v393, 2147483647
    %v398 = vand.u32 %v397, 65535
    %v399 = vshra.s32 %v397, 16
    %v400 = vcvt.s32.f32 %v398
    %v401 = vcvt.s32.f32 %v399
    %402 = vmin.xlane.f32.xlu0 %v401
    %v403 = vpop.xlane.xlu0 %402
    %vm404 = vcmp.eq.f32.partialorder %v401, %v403
    %v405 = vsel %vm404, %v400, inf
    %406 = vmin.xlane.f32.xlu0 %v405
    %v407 = vpop.xlane.xlu0 %406
    %v408 = vcvt.f32.s32 %v407
    %v409 = vcvt.f32.s32 %v403
    %v410 = vshll.u32 %v409, 16
    %v411 = vadd.s32 %v410, %v408
    %v412 = vsel %vm174, %v394, 2147483647
    %v413 = vand.u32 %v412, 65535
    %v414 = vshra.s32 %v412, 16
    %v415 = vcvt.s32.f32 %v413
    %v416 = vcvt.s32.f32 %v414
    %417 = vmin.xlane.f32.xlu0 %v416
    %v418 = vpop.xlane.xlu0 %417
    %vm419 = vcmp.eq.f32.partialorder %v416, %v418
    %v420 = vsel %vm419, %v415, inf
    %421 = vmin.xlane.f32.xlu0 %v420
    %v422 = vpop.xlane.xlu0 %421
    %v423 = vcvt.f32.s32 %v422
    %v424 = vcvt.f32.s32 %v418
    %v425 = vshll.u32 %v424, 16
    %v426 = vadd.s32 %v425, %v423
    %v427 = vsel %vm174, %v395, 2147483647
    %v428 = vand.u32 %v427, 65535
    %v429 = vshra.s32 %v427, 16
    %v430 = vcvt.s32.f32 %v428
    %v431 = vcvt.s32.f32 %v429
    %432 = vmin.xlane.f32.xlu0 %v431
    %v433 = vpop.xlane.xlu0 %432
    %vm434 = vcmp.eq.f32.partialorder %v431, %v433
    %v435 = vsel %vm434, %v430, inf
    %436 = vmin.xlane.f32.xlu0 %v435
    %v437 = vpop.xlane.xlu0 %436
    %v438 = vcvt.f32.s32 %v437
    %v439 = vcvt.f32.s32 %v433
    %v440 = vshll.u32 %v439, 16
    %v441 = vadd.s32 %v440, %v438
    %v442 = vsel %vm174, %v396, 2147483647
    %v443 = vand.u32 %v442, 65535
    %v444 = vshra.s32 %v442, 16
    %v445 = vcvt.s32.f32 %v443
    %v446 = vcvt.s32.f32 %v444
    %447 = vmin.xlane.f32.xlu0 %v446
    %v448 = vpop.xlane.xlu0 %447
    %vm449 = vcmp.eq.f32.partialorder %v446, %v448
    %v450 = vsel %vm449, %v445, inf
    %451 = vmin.xlane.f32.xlu0 %v450
    %v452 = vpop.xlane.xlu0 %451
    %v453 = vcvt.f32.s32 %v452
    %v454 = vcvt.f32.s32 %v448
    %v455 = vshll.u32 %v454, 16
    %v456 = vadd.s32 %v455, %v453
    %v457 = vrot.slane %v411, 4
    %vm458 = vcmp.lt.s32.totalorder %v411, %v457
    %v459 = vsel %vm458, %v411, %v457
    %v460 = vrot.slane %v459, 2
    %vm461 = vcmp.lt.s32.totalorder %v459, %v460
    %v462 = vsel %vm461, %v459, %v460
    %v463 = vrot.slane %v462, 1
    %vm464 = vcmp.lt.s32.totalorder %v462, %v463
    %v465 = vsel %vm464, %v462, %v463
    %v466 = vrot.slane %v426, 4
    %vm467 = vcmp.lt.s32.totalorder %v426, %v466
    %v468 = vsel %vm467, %v426, %v466
    %v469 = vrot.slane %v468, 2
    %vm470 = vcmp.lt.s32.totalorder %v468, %v469
    %v471 = vsel %vm470, %v468, %v469
    %v472 = vrot.slane %v471, 1
    %vm473 = vcmp.lt.s32.totalorder %v471, %v472
    %v474 = vsel %vm473, %v471, %v472
    %v475 = vrot.slane %v441, 4
    %vm476 = vcmp.lt.s32.totalorder %v441, %v475
    %v477 = vsel %vm476, %v441, %v475
    %v478 = vrot.slane %v477, 2
    %vm479 = vcmp.lt.s32.totalorder %v477, %v478
    %v480 = vsel %vm479, %v477, %v478
    %v481 = vrot.slane %v480, 1
    %vm482 = vcmp.lt.s32.totalorder %v480, %v481
    %v483 = vsel %vm482, %v480, %v481
    %v484 = vrot.slane %v456, 4
    %vm485 = vcmp.lt.s32.totalorder %v456, %v484
    %v486 = vsel %vm485, %v456, %v484
    %v487 = vrot.slane %v486, 2
    %vm488 = vcmp.lt.s32.totalorder %v486, %v487
    %v489 = vsel %vm488, %v486, %v487
    %v490 = vrot.slane %v489, 1
    %vm491 = vcmp.lt.s32.totalorder %v489, %v490
    %v492 = vsel %vm491, %v489, %v490
    %vm493 = vcmp.eq.s32.totalorder %v173, %v465
    %vm494 = vcmp.eq.s32.totalorder %v173, %v474
    %vm495 = vcmp.eq.s32.totalorder %v173, %v483
    %vm496 = vcmp.eq.s32.totalorder %v173, %v492
    %v497 = vsel %vm493, -inf, %v319
    %v498 = vsel %vm494, -inf, %v320
    %v499 = vsel %vm495, -inf, %v321
    %v500 = vsel %vm496, -inf, %v322
    %vm501 = vcmp.ge.s32.totalorder %v465, %v170
    %vm502 = vcmp.ge.s32.totalorder %v474, %v170
    %vm503 = vcmp.ge.s32.totalorder %v483, %v170
    %vm504 = vcmp.ge.s32.totalorder %v492, %v170
    %vm505 = vcmp.lt.s32.totalorder %v465, %v328
    %vm506 = vcmp.lt.s32.totalorder %v474, %v328
    %vm507 = vcmp.lt.s32.totalorder %v483, %v328
    %vm508 = vcmp.lt.s32.totalorder %v492, %v328
    %vm509 = vmand %vm501, %vm505
    %vm510 = vmand %vm502, %vm506
    %vm511 = vmand %vm503, %vm507
    %vm512 = vmand %vm504, %vm508
    %v513 = vmax.f32 %v337, %v370
    %v514 = vmax.f32 %v338, %v376
    %v515 = vmax.f32 %v339, %v382
    %v516 = vmax.f32 %v340, %v388
    %v517 = vsel %vm509, %v513, %v337
    %v518 = vsel %vm510, %v514, %v338
    %v519 = vsel %vm511, %v515, %v339
    %v520 = vsel %vm512, %v516, %v340
    %v521 = vsel %vm509, 1, 0
    %v522 = vsel %vm510, 1, 0
    %v523 = vsel %vm511, 1, 0
    %v524 = vsel %vm512, 1, 0
    %v525 = vcvt.s32.f32 %v521
    %v526 = vcvt.s32.f32 %v522
    %v527 = vcvt.s32.f32 %v523
    %v528 = vcvt.s32.f32 %v524
    %v529 = vadd.f32 %v349, %v525
    %v530 = vadd.f32 %v350, %v526
    %v531 = vadd.f32 %v351, %v527
    %v532 = vadd.f32 %v352, %v528
    %v533 = vsel %vm174, %v497, -inf
    %534 = vmax.xlane.f32.xlu0 %v533
    %v535 = vpop.xlane.xlu0 %534
    %v536 = vsel %vm174, %v498, -inf
    %537 = vmax.xlane.f32.xlu0 %v536
    %v538 = vpop.xlane.xlu0 %537
    %v539 = vsel %vm174, %v499, -inf
    %540 = vmax.xlane.f32.xlu0 %v539
    %v541 = vpop.xlane.xlu0 %540
    %v542 = vsel %vm174, %v500, -inf
    %543 = vmax.xlane.f32.xlu0 %v542
    %v544 = vpop.xlane.xlu0 %543
    %v545 = vrot.slane %v535, 4
    %v546 = vmax.f32 %v535, %v545
    %v547 = vrot.slane %v546, 2
    %v548 = vmax.f32 %v546, %v547
    %v549 = vrot.slane %v548, 1
    %v550 = vmax.f32 %v548, %v549
    %v551 = vrot.slane %v538, 4
    %v552 = vmax.f32 %v538, %v551
    %v553 = vrot.slane %v552, 2
    %v554 = vmax.f32 %v552, %v553
    %v555 = vrot.slane %v554, 1
    %v556 = vmax.f32 %v554, %v555
    %v557 = vrot.slane %v541, 4
    %v558 = vmax.f32 %v541, %v557
    %v559 = vrot.slane %v558, 2
    %v560 = vmax.f32 %v558, %v559
    %v561 = vrot.slane %v560, 1
    %v562 = vmax.f32 %v560, %v561
    %v563 = vrot.slane %v544, 4
    %v564 = vmax.f32 %v544, %v563
    %v565 = vrot.slane %v564, 2
    %v566 = vmax.f32 %v564, %v565
    %v567 = vrot.slane %v566, 1
    %v568 = vmax.f32 %v566, %v567
    %vm569 = vcmp.eq.f32.partialorder %v497, %v550
    %vm570 = vcmp.eq.f32.partialorder %v498, %v556
    %vm571 = vcmp.eq.f32.partialorder %v499, %v562
    %vm572 = vcmp.eq.f32.partialorder %v500, %v568
    %v573 = vsel %vm569, %v173, 64
    %v574 = vsel %vm570, %v173, 64
    %v575 = vsel %vm571, %v173, 64
    %v576 = vsel %vm572, %v173, 64
    %v577 = vsel %vm174, %v573, 2147483647
    %v578 = vand.u32 %v577, 65535
    %v579 = vshra.s32 %v577, 16
    %v580 = vcvt.s32.f32 %v578
    %v581 = vcvt.s32.f32 %v579
    %582 = vmin.xlane.f32.xlu0 %v581
    %v583 = vpop.xlane.xlu0 %582
    %vm584 = vcmp.eq.f32.partialorder %v581, %v583
    %v585 = vsel %vm584, %v580, inf
    %586 = vmin.xlane.f32.xlu0 %v585
    %v587 = vpop.xlane.xlu0 %586
    %v588 = vcvt.f32.s32 %v587
    %v589 = vcvt.f32.s32 %v583
    %v590 = vshll.u32 %v589, 16
    %v591 = vadd.s32 %v590, %v588
    %v592 = vsel %vm174, %v574, 2147483647
    %v593 = vand.u32 %v592, 65535
    %v594 = vshra.s32 %v592, 16
    %v595 = vcvt.s32.f32 %v593
    %v596 = vcvt.s32.f32 %v594
    %597 = vmin.xlane.f32.xlu0 %v596
    %v598 = vpop.xlane.xlu0 %597
    %vm599 = vcmp.eq.f32.partialorder %v596, %v598
    %v600 = vsel %vm599, %v595, inf
    %601 = vmin.xlane.f32.xlu0 %v600
    %v602 = vpop.xlane.xlu0 %601
    %v603 = vcvt.f32.s32 %v602
    %v604 = vcvt.f32.s32 %v598
    %v605 = vshll.u32 %v604, 16
    %v606 = vadd.s32 %v605, %v603
    %v607 = vsel %vm174, %v575, 2147483647
    %v608 = vand.u32 %v607, 65535
    %v609 = vshra.s32 %v607, 16
    %v610 = vcvt.s32.f32 %v608
    %v611 = vcvt.s32.f32 %v609
    %612 = vmin.xlane.f32.xlu0 %v611
    %v613 = vpop.xlane.xlu0 %612
    %vm614 = vcmp.eq.f32.partialorder %v611, %v613
    %v615 = vsel %vm614, %v610, inf
    %616 = vmin.xlane.f32.xlu0 %v615
    %v617 = vpop.xlane.xlu0 %616
    %v618 = vcvt.f32.s32 %v617
    %v619 = vcvt.f32.s32 %v613
    %v620 = vshll.u32 %v619, 16
    %v621 = vadd.s32 %v620, %v618
    %v622 = vsel %vm174, %v576, 2147483647
    %v623 = vand.u32 %v622, 65535
    %v624 = vshra.s32 %v622, 16
    %v625 = vcvt.s32.f32 %v623
    %v626 = vcvt.s32.f32 %v624
    %627 = vmin.xlane.f32.xlu0 %v626
    %v628 = vpop.xlane.xlu0 %627
    %vm629 = vcmp.eq.f32.partialorder %v626, %v628
    %v630 = vsel %vm629, %v625, inf
    %631 = vmin.xlane.f32.xlu0 %v630
    %v632 = vpop.xlane.xlu0 %631
    %v633 = vcvt.f32.s32 %v632
    %v634 = vcvt.f32.s32 %v628
    %v635 = vshll.u32 %v634, 16
    %v636 = vadd.s32 %v635, %v633
    %v637 = vrot.slane %v591, 4
    %vm638 = vcmp.lt.s32.totalorder %v591, %v637
    %v639 = vsel %vm638, %v591, %v637
    %v640 = vrot.slane %v639, 2
    %vm641 = vcmp.lt.s32.totalorder %v639, %v640
    %v642 = vsel %vm641, %v639, %v640
    %v643 = vrot.slane %v642, 1
    %vm644 = vcmp.lt.s32.totalorder %v642, %v643
    %v645 = vsel %vm644, %v642, %v643
    %v646 = vrot.slane %v606, 4
    %vm647 = vcmp.lt.s32.totalorder %v606, %v646
    %v648 = vsel %vm647, %v606, %v646
    %v649 = vrot.slane %v648, 2
    %vm650 = vcmp.lt.s32.totalorder %v648, %v649
    %v651 = vsel %vm650, %v648, %v649
    %v652 = vrot.slane %v651, 1
    %vm653 = vcmp.lt.s32.totalorder %v651, %v652
    %v654 = vsel %vm653, %v651, %v652
    %v655 = vrot.slane %v621, 4
    %vm656 = vcmp.lt.s32.totalorder %v621, %v655
    %v657 = vsel %vm656, %v621, %v655
    %v658 = vrot.slane %v657, 2
    %vm659 = vcmp.lt.s32.totalorder %v657, %v658
    %v660 = vsel %vm659, %v657, %v658
    %v661 = vrot.slane %v660, 1
    %vm662 = vcmp.lt.s32.totalorder %v660, %v661
    %v663 = vsel %vm662, %v660, %v661
    %v664 = vrot.slane %v636, 4
    %vm665 = vcmp.lt.s32.totalorder %v636, %v664
    %v666 = vsel %vm665, %v636, %v664
    %v667 = vrot.slane %v666, 2
    %vm668 = vcmp.lt.s32.totalorder %v666, %v667
    %v669 = vsel %vm668, %v666, %v667
    %v670 = vrot.slane %v669, 1
    %vm671 = vcmp.lt.s32.totalorder %v669, %v670
    %v672 = vsel %vm671, %v669, %v670
    %vm673 = vcmp.ge.s32.totalorder %v645, %v170
    %vm674 = vcmp.ge.s32.totalorder %v654, %v170
    %vm675 = vcmp.ge.s32.totalorder %v663, %v170
    %vm676 = vcmp.ge.s32.totalorder %v672, %v170
    %vm677 = vcmp.lt.s32.totalorder %v645, %v328
    %vm678 = vcmp.lt.s32.totalorder %v654, %v328
    %vm679 = vcmp.lt.s32.totalorder %v663, %v328
    %vm680 = vcmp.lt.s32.totalorder %v672, %v328
    %vm681 = vmand %vm673, %vm677
    %vm682 = vmand %vm674, %vm678
    %vm683 = vmand %vm675, %vm679
    %vm684 = vmand %vm676, %vm680
    %v685 = vmax.f32 %v517, %v550
    %v686 = vmax.f32 %v518, %v556
    %v687 = vmax.f32 %v519, %v562
    %v688 = vmax.f32 %v520, %v568
    %v689 = vsel %vm681, %v685, %v517
    %v690 = vsel %vm682, %v686, %v518
    %v691 = vsel %vm683, %v687, %v519
    %v692 = vsel %vm684, %v688, %v520
    %v693 = vsel %vm681, 1, 0
    %v694 = vsel %vm682, 1, 0
    %v695 = vsel %vm683, 1, 0
    %v696 = vsel %vm684, 1, 0
    %v697 = vcvt.s32.f32 %v693
    %v698 = vcvt.s32.f32 %v694
    %v699 = vcvt.s32.f32 %v695
    %v700 = vcvt.s32.f32 %v696
    %v701 = vadd.f32 %v529, %v697
    %v702 = vadd.f32 %v530, %v698
    %v703 = vadd.f32 %v531, %v699
    %v704 = vadd.f32 %v532, %v700
    %vm705 = vcmp.gt.f32.partialorder %v701, 0.0
    %vm706 = vcmp.gt.f32.partialorder %v702, 0.0
    %vm707 = vcmp.gt.f32.partialorder %v703, 0.0
    %vm708 = vcmp.gt.f32.partialorder %v704, 0.0
    %vm709 = vcmp.ge.f32.partialorder %v701, 8.0
    %vm710 = vcmp.ge.f32.partialorder %v702, 8.0
    %vm711 = vcmp.ge.f32.partialorder %v703, 8.0
    %vm712 = vcmp.ge.f32.partialorder %v704, 8.0
    %v713 = vmax.f32 %v689, 0.0
    %v714 = vmax.f32 %v690, 0.0
    %v715 = vmax.f32 %v691, 0.0
    %v716 = vmax.f32 %v692, 0.0
    %v717 = vsel %vm709, %v689, %v713
    %v718 = vsel %vm710, %v690, %v714
    %v719 = vsel %vm711, %v691, %v715
    %v720 = vsel %vm712, %v692, %v716
    %v721 = vsel %vm705, %v717, 0.0
    %v722 = vsel %vm706, %v718, 0.0
    %v723 = vsel %vm707, %v719, 0.0
    %v724 = vsel %vm708, %v720, 0.0
    %v725 = vsel %vm705, 1, 0
    %v726 = vsel %vm706, 1, 0
    %v727 = vsel %vm707, 1, 0
    %v728 = vsel %vm708, 1, 0
    %v729 = vcvt.s32.f32 %v725
    %v730 = vcvt.s32.f32 %v726
    %v731 = vcvt.s32.f32 %v727
    %v732 = vcvt.s32.f32 %v728
    %v733 = vrot.slane %v729, 4
    %v734 = vadd.f32 %v729, %v733
    %v735 = vrot.slane %v734, 2
    %v736 = vadd.f32 %v734, %v735
    %v737 = vrot.slane %v736, 1
    %v738 = vadd.f32 %v736, %v737
    %v739 = vrot.slane %v730, 4
    %v740 = vadd.f32 %v730, %v739
    %v741 = vrot.slane %v740, 2
    %v742 = vadd.f32 %v740, %v741
    %v743 = vrot.slane %v742, 1
    %v744 = vadd.f32 %v742, %v743
    %v745 = vrot.slane %v731, 4
    %v746 = vadd.f32 %v731, %v745
    %v747 = vrot.slane %v746, 2
    %v748 = vadd.f32 %v746, %v747
    %v749 = vrot.slane %v748, 1
    %v750 = vadd.f32 %v748, %v749
    %v751 = vrot.slane %v732, 4
    %v752 = vadd.f32 %v732, %v751
    %v753 = vrot.slane %v752, 2
    %v754 = vadd.f32 %v752, %v753
    %v755 = vrot.slane %v754, 1
    %v756 = vadd.f32 %v754, %v755
    %v757 = vmax.f32 %v738, 0.001
    %v758 = vmax.f32 %v744, 0.001
    %v759 = vmax.f32 %v750, 0.001
    %v760 = vmax.f32 %v756, 0.001
    %v761 = vrot.slane %v721, 4
    %v762 = vadd.f32 %v721, %v761
    %v763 = vrot.slane %v762, 2
    %v764 = vadd.f32 %v762, %v763
    %v765 = vrot.slane %v764, 1
    %v766 = vadd.f32 %v764, %v765
    %v767 = vrot.slane %v722, 4
    %v768 = vadd.f32 %v722, %v767
    %v769 = vrot.slane %v768, 2
    %v770 = vadd.f32 %v768, %v769
    %v771 = vrot.slane %v770, 1
    %v772 = vadd.f32 %v770, %v771
    %v773 = vrot.slane %v723, 4
    %v774 = vadd.f32 %v723, %v773
    %v775 = vrot.slane %v774, 2
    %v776 = vadd.f32 %v774, %v775
    %v777 = vrot.slane %v776, 1
    %v778 = vadd.f32 %v776, %v777
    %v779 = vrot.slane %v724, 4
    %v780 = vadd.f32 %v724, %v779
    %v781 = vrot.slane %v780, 2
    %v782 = vadd.f32 %v780, %v781
    %v783 = vrot.slane %v782, 1
    %v784 = vadd.f32 %v782, %v783
    %v785 = vrcp.pop %v757
    %v786 = vmul.f32 %v757, %v785
    %v787 = vsub.f32 1.0, %v786
    %v788 = vmul.f32 %v785, %v787
    %v789 = vadd.f32 %v785, %v788
    %vm790 = vweird.f32 %v757
    %vm791 = vweird.f32 %v785
    %vm792 = vmor %vm790, %vm791
    %v793 = vsel %vm792, %v785, %v789
    %v794 = vand.u32 2147483647, %v757
    %vm795 = vcmp.eq.f32.partialorder %v794, 8.507059e+37
    %v796 = vand.u32 %v757, 2147483648
    %v797 = vor.u32 1.1754944e-38, %v796
    %v798 = vsel %vm795, %v797, %v793
    %v799 = vmul.f32 %v766, %v798
    %v800 = vrcp.pop %v758
    %v801 = vmul.f32 %v758, %v800
    %v802 = vsub.f32 1.0, %v801
    %v803 = vmul.f32 %v800, %v802
    %v804 = vadd.f32 %v800, %v803
    %vm805 = vweird.f32 %v758
    %vm806 = vweird.f32 %v800
    %vm807 = vmor %vm805, %vm806
    %v808 = vsel %vm807, %v800, %v804
    %v809 = vand.u32 2147483647, %v758
    %vm810 = vcmp.eq.f32.partialorder %v809, 8.507059e+37
    %v811 = vand.u32 %v758, 2147483648
    %v812 = vor.u32 1.1754944e-38, %v811
    %v813 = vsel %vm810, %v812, %v808
    %v814 = vmul.f32 %v772, %v813
    %v815 = vrcp.pop %v759
    %v816 = vmul.f32 %v759, %v815
    %v817 = vsub.f32 1.0, %v816
    %v818 = vmul.f32 %v815, %v817
    %v819 = vadd.f32 %v815, %v818
    %vm820 = vweird.f32 %v759
    %vm821 = vweird.f32 %v815
    %vm822 = vmor %vm820, %vm821
    %v823 = vsel %vm822, %v815, %v819
    %v824 = vand.u32 2147483647, %v759
    %vm825 = vcmp.eq.f32.partialorder %v824, 8.507059e+37
    %v826 = vand.u32 %v759, 2147483648
    %v827 = vor.u32 1.1754944e-38, %v826
    %v828 = vsel %vm825, %v827, %v823
    %v829 = vmul.f32 %v778, %v828
    %v830 = vrcp.pop %v760
    %v831 = vmul.f32 %v760, %v830
    %v832 = vsub.f32 1.0, %v831
    %v833 = vmul.f32 %v830, %v832
    %v834 = vadd.f32 %v830, %v833
    %vm835 = vweird.f32 %v760
    %vm836 = vweird.f32 %v830
    %vm837 = vmor %vm835, %vm836
    %v838 = vsel %vm837, %v830, %v834
    %v839 = vand.u32 2147483647, %v760
    %vm840 = vcmp.eq.f32.partialorder %v839, 8.507059e+37
    %v841 = vand.u32 %v760, 2147483648
    %v842 = vor.u32 1.1754944e-38, %v841
    %v843 = vsel %vm840, %v842, %v838
    %v844 = vmul.f32 %v784, %v843
    %vm845 = vcmask 0
    %846 = vst.msk [vmem:[%s3] sm:$0x1] %vm845, %v799
    %847 = vst.msk [vmem:[%s3 + $0x1] sm:$0x1] %vm845, %v814
    %848 = vst.msk [vmem:[%s4] sm:$0x1] %vm845, %v829
    %849 = vst.msk [vmem:[%s4 + $0x1] sm:$0x1] %vm845, %v844
    // Predicated region
    $region26: #{xtr_pairwise_ce_loss.1} parent=1 // pred_check
      _
    $region27: #{xtr_pairwise_ce_loss.1} parent=1 // pred_check_branch
      %851 = sbr.rel (0) target = $region29
    $region28: #{xtr_pairwise_ce_loss.1} parent=1 // pred_region
      _
    $region29: #{xtr_pairwise_ce_loss.1} parent=1 // pred_fallthru
      _
    // Predicated region
    $region30: #{xtr_pairwise_ce_loss.1} parent=1 // pred_check
      _
    $region31: #{xtr_pairwise_ce_loss.1} parent=1 // pred_check_branch
      %853 = sbr.rel (0) target = $region33
    $region32: #{xtr_pairwise_ce_loss.1} parent=1 // pred_region
      _
    $region33: #{xtr_pairwise_ce_loss.1} parent=1 // pred_fallthru
      _
    // Predicated region
    $region34: #{xtr_pairwise_ce_loss.1} parent=1 // pred_check
      _
    $region35: #{xtr_pairwise_ce_loss.1} parent=1 // pred_check_branch
      %855 = sbr.rel (0) target = $region37
    $region36: #{xtr_pairwise_ce_loss.1} parent=1 // pred_region
      _
    $region37: #{xtr_pairwise_ce_loss.1} parent=1 // pred_fallthru
      _
    // Predicated region
    $region38: #{xtr_pairwise_ce_loss.1} parent=1 // pred_check
      _
    $region39: #{xtr_pairwise_ce_loss.1} parent=1 // pred_check_branch
      %857 = sbr.rel (0) target = $region41
    $region40: #{xtr_pairwise_ce_loss.1} parent=1 // pred_region
      _
    $region41: #{xtr_pairwise_ce_loss.1} parent=1 // pred_fallthru
      _
    %858 = vsyncpa [#allocation3], 1
    %859 = vsyncpa [#allocation5], 1

</llo_original>
